<compile_context>
chip_gen: v7x
topology: tpu7x:2x2x1
jax: 0.10.0
libtpu: 0.0.40
codegen_flags: <defaults>
</compile_context>

<pallas_src>
import jax
import jax.numpy as jnp
from jax.experimental import pallas as pl
from jax.experimental.pallas import tpu as pltpu

H = 16
W = 16
C_LAT = 4            # latent channels of z / c_concat / output
C_IN = 2 * C_LAT     # synthetic inner model consumes concat([z, c_concat]) on channels
SEQ = 8              # c_crossattn sequence length
DCTX = 32            # c_crossattn hidden size
HW = H * W


# -----------------------------------------------------------------------------
# Fused kernel: inner_model on the 3 CFG rows + CFG combine, single grid step.
#   inner(x, ctx, sigma) = (x @ Wp + mean_seq(ctx) @ Wc + b) * sigma
#   out = out_uncond + t * (out_cond - out_img_cond) + i * (out_img_cond - out_uncond)
# Layout inside the kernel: channels on sublanes, pixels (H*W = 256) on lanes.
# -----------------------------------------------------------------------------
def _cfg_denoiser_fused_kernel(scalars_ref,                      # SMEM (3,): sigma, t, i
                               z_ref, ccc_ref, ucc_ref,          # [C_LAT, 1, HW] latents
                               cca_ref, uca_ref,                 # [1, SEQ*DCTX] crossattn (flat)
                               wpc_ref,                          # [C_IN, C_LAT, 1] wp columns
                               wcr_ref,                          # [C_LAT, SEQ*DCTX] wc^T tiled
                               b_ref,                            # [C_LAT, 1] bias column
                               o_ref):                           # [C_LAT, HW] output
    sigma = scalars_ref[0]
    text_scale = scalars_ref[1]
    image_scale = scalars_ref[2]

    b_col = b_ref[...]                                           # [C_LAT, 1]

    # --- pixel-wise channel projection: VPU broadcast-FMA, no MXU ------------
    #   y[co, p] = sum_ci x[ci, p] * wp[ci_offset + ci, co]
    # x3_ref[ci] is a [1, HW] row (pixels on lanes), wpc_ref[k] is a [C_LAT, 1]
    # weight column; their product broadcasts to the full [C_LAT, HW] tile.
    def pixel_proj(x3_ref, wp_offset):
        acc = x3_ref[0] * wpc_ref[wp_offset]
        for ci in range(1, C_LAT):
            acc = acc + x3_ref[ci] * wpc_ref[wp_offset + ci]
        return acc                                               # [C_LAT, HW]

    y_z = pixel_proj(z_ref, 0)                 # z contribution, shared by all 3 rows
    y_cc_cond = pixel_proj(ccc_ref, C_LAT)     # cond  c_concat contribution
    y_cc_unc = pixel_proj(ucc_ref, C_LAT)      # uncond c_concat contribution

    # --- cross-attention context projection (lane reduce only) ---------------
    #   ctx[co] = sum_d mean_s(ca[s, d]) * wc[d, co]
    #           = (1/SEQ) * sum_{s,d} ca_flat[s*DCTX + d] * wc_rep[co, s*DCTX + d]
    inv_seq = jnp.float32(1.0 / SEQ)
    wcr = wcr_ref[...]                                           # [C_LAT, SEQ*DCTX]
    ctx_cond = jnp.sum(cca_ref[...] * wcr, axis=1, keepdims=True) * inv_seq   # [C_LAT, 1]
    ctx_unc = jnp.sum(uca_ref[...] * wcr, axis=1, keepdims=True) * inv_seq    # [C_LAT, 1]

    # --- synthetic inner model, with the CFGDenoiser routing -----------------
    #   row 0: crossattn = cond,   c_concat = cond     -> out_cond
    #   row 1: crossattn = uncond, c_concat = cond     -> out_img_cond
    #   row 2: crossattn = uncond, c_concat = uncond   -> out_uncond
    out_cond = (y_z + y_cc_cond + ctx_cond + b_col) * sigma
    out_img_cond = (y_z + y_cc_cond + ctx_unc + b_col) * sigma
    out_uncond = (y_z + y_cc_unc + ctx_unc + b_col) * sigma

    # --- classifier-free-guidance combine (lane-dense [4, 256] store) --------
    o_ref[...] = (out_uncond
                  + text_scale * (out_cond - out_img_cond)
                  + image_scale * (out_img_cond - out_uncond))


# -----------------------------------------------------------------------------
# CFGDenoiser.forward
# -----------------------------------------------------------------------------
@jax.jit
def cfg_denoiser_forward(params, z, sigma, cond, uncond, text_cfg_scale, image_cfg_scale):
    f32 = jnp.float32

    # NCHW latents -> [C, 1, H*W]: contiguity-preserving reshape (no transpose),
    # channels end up on sublanes, pixels on lanes inside the kernel.
    z3 = z.astype(f32).reshape(C_LAT, 1, HW)
    cc_cond = cond['c_concat'][0].astype(f32).reshape(C_LAT, 1, HW)
    cc_unc = uncond['c_concat'][0].astype(f32).reshape(C_LAT, 1, HW)

    # crossattn [1, SEQ, DCTX] -> flat [1, SEQ*DCTX] (lane axis), so the context
    # projection is a pure lane reduce in-kernel.
    ca_cond = cond['c_crossattn'][0].astype(f32).reshape(1, SEQ * DCTX)
    ca_unc = uncond['c_crossattn'][0].astype(f32).reshape(1, SEQ * DCTX)

    # Weight preprocessing (tiny, one-time inside the jitted program):
    #   wp [C_IN, C_LAT]  -> per-input-channel [C_LAT, 1] columns
    #   wc [DCTX, C_LAT]  -> wc^T tiled SEQ times along lanes: [C_LAT, SEQ*DCTX]
    #   b  [1, C_LAT]     -> column [C_LAT, 1]
    wp_cols = params['wp'].astype(f32).reshape(C_IN, C_LAT, 1)
    wc_rep = jnp.tile(params['wc'].astype(f32).T, (1, SEQ))
    b_col = params['b'].astype(f32).reshape(C_LAT, 1)

    scalars = jnp.concatenate([
        jnp.asarray(sigma, f32).reshape(-1)[:1],         # einops.repeat(sigma, '1 -> 3'): same value
        jnp.asarray(text_cfg_scale, f32).reshape(1),
        jnp.asarray(image_cfg_scale, f32).reshape(1),
    ])

    out = pl.pallas_call(
        _cfg_denoiser_fused_kernel,
        out_shape=jax.ShapeDtypeStruct((C_LAT, HW), f32),
        grid=(1,),                                                  # single step: launch-bound workload
        in_specs=[
            pl.BlockSpec(memory_space=pltpu.MemorySpace.SMEM),      # scalars (3,)
            pl.BlockSpec((C_LAT, 1, HW), lambda i: (0, 0, 0)),      # z
            pl.BlockSpec((C_LAT, 1, HW), lambda i: (0, 0, 0)),      # cond  c_concat
            pl.BlockSpec((C_LAT, 1, HW), lambda i: (0, 0, 0)),      # uncond c_concat
            pl.BlockSpec((1, SEQ * DCTX), lambda i: (0, 0)),        # cond  c_crossattn (flat)
            pl.BlockSpec((1, SEQ * DCTX), lambda i: (0, 0)),        # uncond c_crossattn (flat)
            pl.BlockSpec((C_IN, C_LAT, 1), lambda i: (0, 0, 0)),    # wp columns
            pl.BlockSpec((C_LAT, SEQ * DCTX), lambda i: (0, 0)),    # wc^T tiled over seq
            pl.BlockSpec((C_LAT, 1), lambda i: (0, 0)),             # bias column
        ],
        out_specs=pl.BlockSpec((C_LAT, HW), lambda i: (0, 0)),      # lane-dense [4, 256]
        compiler_params=pltpu.CompilerParams(dimension_semantics=("arbitrary",)),
    )(scalars, z3, cc_cond, cc_unc, ca_cond, ca_unc, wp_cols, wc_rep, b_col)

    # [C, H*W] -> NCHW [1, C, H, W]: pure reshape, matches the PyTorch return.
    return out.reshape(1, C_LAT, H, W)


# -----------------------------------------------------------------------------
# pure-JAX reference (mirrors the original module's batching/routing exactly)
# -----------------------------------------------------------------------------
def _nchw_to_nlc(x):
    n, c, h, w = x.shape
    return jnp.transpose(x, (0, 2, 3, 1)).reshape(n, h * w, c)


def reference_forward(params, z, sigma, cond, uncond, text_cfg_scale, image_cfg_scale):
    cfg_z = jnp.concatenate([z, z, z], axis=0)
    cfg_sigma = jnp.concatenate([sigma, sigma, sigma], axis=0).astype(jnp.float32)
    ca = jnp.concatenate([cond['c_crossattn'][0], uncond['c_crossattn'][0],
                          uncond['c_crossattn'][0]], axis=0)
    cc = jnp.concatenate([cond['c_concat'][0], cond['c_concat'][0],
                          uncond['c_concat'][0]], axis=0)
    x = jnp.concatenate([_nchw_to_nlc(cfg_z), _nchw_to_nlc(cc)], axis=-1)
    y = x @ params['wp']
    ctx = jnp.mean(ca, axis=1) @ params['wc']
    out3 = (y + ctx[:, None, :] + params['b']) * cfg_sigma[:, None, None]
    oc, oi, ou = out3[0], out3[1], out3[2]
    out = ou + text_cfg_scale * (oc - oi) + image_cfg_scale * (oi - ou)
    return jnp.transpose(out.reshape(1, H, W, C_LAT), (0, 3, 1, 2))


if __name__ == "__main__":
    key = jax.random.PRNGKey(0)
    ks = jax.random.split(key, 8)

    z = jax.random.normal(ks[0], (1, C_LAT, H, W), jnp.float32)
    sigma = jnp.array([0.7], jnp.float32)
    cond = {
        'c_crossattn': [jax.random.normal(ks[1], (1, SEQ, DCTX), jnp.float32)],
        'c_concat': [jax.random.normal(ks[2], (1, C_LAT, H, W), jnp.float32)],
    }
    uncond = {
        'c_crossattn': [jax.random.normal(ks[3], (1, SEQ, DCTX), jnp.float32)],
        'c_concat': [jax.random.normal(ks[4], (1, C_LAT, H, W), jnp.float32)],
    }
    params = {
        'wp': 0.1 * jax.random.normal(ks[5], (C_IN, C_LAT), jnp.float32),
        'wc': 0.1 * jax.random.normal(ks[6], (DCTX, C_LAT), jnp.float32),
        'b': 0.1 * jax.random.normal(ks[7], (1, C_LAT), jnp.float32),
    }
    text_cfg_scale = 7.5
    image_cfg_scale = 1.5

    out = cfg_denoiser_forward(params, z, sigma, cond, uncond,
                               text_cfg_scale, image_cfg_scale)
    out = jax.block_until_ready(out)

    ref = reference_forward(params, z, sigma, cond, uncond,
                            text_cfg_scale, image_cfg_scale)

    assert out.shape == (1, C_LAT, H, W), out.shape
    assert jnp.allclose(out, ref, atol=1e-4, rtol=1e-4), float(jnp.max(jnp.abs(out - ref)))
    print("KERNEL_OK")
</pallas_src>

<mosaic_0001>
module attributes {stable_mosaic.version = 11 : i64} {
  func.func @_cfg_denoiser_fused_kernel(%arg0: i32, %arg1: memref<3xf32, #tpu.memory_space<smem>>, %arg2: memref<4x1x256xf32, #tpu.memory_space<vmem>>, %arg3: memref<4x1x256xf32, #tpu.memory_space<vmem>>, %arg4: memref<4x1x256xf32, #tpu.memory_space<vmem>>, %arg5: memref<1x256xf32, #tpu.memory_space<vmem>>, %arg6: memref<1x256xf32, #tpu.memory_space<vmem>>, %arg7: memref<8x4x1xf32, #tpu.memory_space<vmem>>, %arg8: memref<4x256xf32, #tpu.memory_space<vmem>>, %arg9: memref<4x1xf32, #tpu.memory_space<vmem>>, %arg10: memref<4x256xf32, #tpu.memory_space<vmem>>) attributes {dimension_semantics = [#tpu.dimension_semantics<arbitrary>], iteration_bounds = array<i64: 1>, scalar_prefetch = 0 : i64, scratch_operands = 0 : i64, tpu.core_type = #tpu.core_type<tc>, window_params = [{transform_indices = @transform_0, window_bounds = array<i64: 3>}, {pipeline_mode = #tpu.pipeline_mode<synchronous>, transform_indices = @transform_1, window_bounds = array<i64: 4, 1, 256>}, {pipeline_mode = #tpu.pipeline_mode<synchronous>, transform_indices = @transform_2, window_bounds = array<i64: 4, 1, 256>}, {pipeline_mode = #tpu.pipeline_mode<synchronous>, transform_indices = @transform_3, window_bounds = array<i64: 4, 1, 256>}, {pipeline_mode = #tpu.pipeline_mode<synchronous>, transform_indices = @transform_4, window_bounds = array<i64: 1, 256>}, {pipeline_mode = #tpu.pipeline_mode<synchronous>, transform_indices = @transform_5, window_bounds = array<i64: 1, 256>}, {pipeline_mode = #tpu.pipeline_mode<synchronous>, transform_indices = @transform_6, window_bounds = array<i64: 8, 4, 1>}, {pipeline_mode = #tpu.pipeline_mode<synchronous>, transform_indices = @transform_7, window_bounds = array<i64: 4, 256>}, {pipeline_mode = #tpu.pipeline_mode<synchronous>, transform_indices = @transform_8, window_bounds = array<i64: 4, 1>}, {pipeline_mode = #tpu.pipeline_mode<synchronous>, transform_indices = @transform_9, window_bounds = array<i64: 4, 256>}]} {
    %c0 = arith.constant 0 : index
    %0 = memref.load %arg1[%c0] : memref<3xf32, #tpu.memory_space<smem>>
    %c1 = arith.constant 1 : index
    %1 = memref.load %arg1[%c1] : memref<3xf32, #tpu.memory_space<smem>>
    %c2 = arith.constant 2 : index
    %2 = memref.load %arg1[%c2] : memref<3xf32, #tpu.memory_space<smem>>
    %c0_0 = arith.constant 0 : index
    %c0_1 = arith.constant 0 : index
    %3 = vector.load %arg9[%c0_0, %c0_1] : memref<4x1xf32, #tpu.memory_space<vmem>>, vector<4x1xf32>
    %c0_2 = arith.constant 0 : index
    %c0_3 = arith.constant 0 : index
    %c0_4 = arith.constant 0 : index
    %4 = vector.load %arg2[%c0_2, %c0_3, %c0_4] : memref<4x1x256xf32, #tpu.memory_space<vmem>>, vector<1x1x256xf32>
    %5 = vector.shape_cast %4 : vector<1x1x256xf32> to vector<1x256xf32>
    %c0_5 = arith.constant 0 : index
    %c0_6 = arith.constant 0 : index
    %c0_7 = arith.constant 0 : index
    %6 = vector.load %arg7[%c0_5, %c0_6, %c0_7] : memref<8x4x1xf32, #tpu.memory_space<vmem>>, vector<1x4x1xf32>
    %7 = vector.shape_cast %6 : vector<1x4x1xf32> to vector<4x1xf32>
    %8 = vector.broadcast %5 : vector<1x256xf32> to vector<4x256xf32>
    %9 = vector.broadcast %7 : vector<4x1xf32> to vector<4x256xf32>
    %10 = arith.mulf %8, %9 : vector<4x256xf32>
    %c1_8 = arith.constant 1 : index
    %c0_9 = arith.constant 0 : index
    %c0_10 = arith.constant 0 : index
    %11 = vector.load %arg2[%c1_8, %c0_9, %c0_10] : memref<4x1x256xf32, #tpu.memory_space<vmem>>, vector<1x1x256xf32>
    %12 = vector.shape_cast %11 : vector<1x1x256xf32> to vector<1x256xf32>
    %c1_11 = arith.constant 1 : index
    %c0_12 = arith.constant 0 : index
    %c0_13 = arith.constant 0 : index
    %13 = vector.load %arg7[%c1_11, %c0_12, %c0_13] : memref<8x4x1xf32, #tpu.memory_space<vmem>>, vector<1x4x1xf32>
    %14 = vector.shape_cast %13 : vector<1x4x1xf32> to vector<4x1xf32>
    %15 = vector.broadcast %12 : vector<1x256xf32> to vector<4x256xf32>
    %16 = vector.broadcast %14 : vector<4x1xf32> to vector<4x256xf32>
    %17 = arith.mulf %15, %16 : vector<4x256xf32>
    %18 = arith.addf %10, %17 : vector<4x256xf32>
    %c2_14 = arith.constant 2 : index
    %c0_15 = arith.constant 0 : index
    %c0_16 = arith.constant 0 : index
    %19 = vector.load %arg2[%c2_14, %c0_15, %c0_16] : memref<4x1x256xf32, #tpu.memory_space<vmem>>, vector<1x1x256xf32>
    %20 = vector.shape_cast %19 : vector<1x1x256xf32> to vector<1x256xf32>
    %c2_17 = arith.constant 2 : index
    %c0_18 = arith.constant 0 : index
    %c0_19 = arith.constant 0 : index
    %21 = vector.load %arg7[%c2_17, %c0_18, %c0_19] : memref<8x4x1xf32, #tpu.memory_space<vmem>>, vector<1x4x1xf32>
    %22 = vector.shape_cast %21 : vector<1x4x1xf32> to vector<4x1xf32>
    %23 = vector.broadcast %20 : vector<1x256xf32> to vector<4x256xf32>
    %24 = vector.broadcast %22 : vector<4x1xf32> to vector<4x256xf32>
    %25 = arith.mulf %23, %24 : vector<4x256xf32>
    %26 = arith.addf %18, %25 : vector<4x256xf32>
    %c3 = arith.constant 3 : index
    %c0_20 = arith.constant 0 : index
    %c0_21 = arith.constant 0 : index
    %27 = vector.load %arg2[%c3, %c0_20, %c0_21] : memref<4x1x256xf32, #tpu.memory_space<vmem>>, vector<1x1x256xf32>
    %28 = vector.shape_cast %27 : vector<1x1x256xf32> to vector<1x256xf32>
    %c3_22 = arith.constant 3 : index
    %c0_23 = arith.constant 0 : index
    %c0_24 = arith.constant 0 : index
    %29 = vector.load %arg7[%c3_22, %c0_23, %c0_24] : memref<8x4x1xf32, #tpu.memory_space<vmem>>, vector<1x4x1xf32>
    %30 = vector.shape_cast %29 : vector<1x4x1xf32> to vector<4x1xf32>
    %31 = vector.broadcast %28 : vector<1x256xf32> to vector<4x256xf32>
    %32 = vector.broadcast %30 : vector<4x1xf32> to vector<4x256xf32>
    %33 = arith.mulf %31, %32 : vector<4x256xf32>
    %34 = arith.addf %26, %33 : vector<4x256xf32>
    %c0_25 = arith.constant 0 : index
    %c0_26 = arith.constant 0 : index
    %c0_27 = arith.constant 0 : index
    %35 = vector.load %arg3[%c0_25, %c0_26, %c0_27] : memref<4x1x256xf32, #tpu.memory_space<vmem>>, vector<1x1x256xf32>
    %36 = vector.shape_cast %35 : vector<1x1x256xf32> to vector<1x256xf32>
    %c4 = arith.constant 4 : index
    %c0_28 = arith.constant 0 : index
    %c0_29 = arith.constant 0 : index
    %37 = vector.load %arg7[%c4, %c0_28, %c0_29] : memref<8x4x1xf32, #tpu.memory_space<vmem>>, vector<1x4x1xf32>
    %38 = vector.shape_cast %37 : vector<1x4x1xf32> to vector<4x1xf32>
    %39 = vector.broadcast %36 : vector<1x256xf32> to vector<4x256xf32>
    %40 = vector.broadcast %38 : vector<4x1xf32> to vector<4x256xf32>
    %41 = arith.mulf %39, %40 : vector<4x256xf32>
    %c1_30 = arith.constant 1 : index
    %c0_31 = arith.constant 0 : index
    %c0_32 = arith.constant 0 : index
    %42 = vector.load %arg3[%c1_30, %c0_31, %c0_32] : memref<4x1x256xf32, #tpu.memory_space<vmem>>, vector<1x1x256xf32>
    %43 = vector.shape_cast %42 : vector<1x1x256xf32> to vector<1x256xf32>
    %c5 = arith.constant 5 : index
    %c0_33 = arith.constant 0 : index
    %c0_34 = arith.constant 0 : index
    %44 = vector.load %arg7[%c5, %c0_33, %c0_34] : memref<8x4x1xf32, #tpu.memory_space<vmem>>, vector<1x4x1xf32>
    %45 = vector.shape_cast %44 : vector<1x4x1xf32> to vector<4x1xf32>
    %46 = vector.broadcast %43 : vector<1x256xf32> to vector<4x256xf32>
    %47 = vector.broadcast %45 : vector<4x1xf32> to vector<4x256xf32>
    %48 = arith.mulf %46, %47 : vector<4x256xf32>
    %49 = arith.addf %41, %48 : vector<4x256xf32>
    %c2_35 = arith.constant 2 : index
    %c0_36 = arith.constant 0 : index
    %c0_37 = arith.constant 0 : index
    %50 = vector.load %arg3[%c2_35, %c0_36, %c0_37] : memref<4x1x256xf32, #tpu.memory_space<vmem>>, vector<1x1x256xf32>
    %51 = vector.shape_cast %50 : vector<1x1x256xf32> to vector<1x256xf32>
    %c6 = arith.constant 6 : index
    %c0_38 = arith.constant 0 : index
    %c0_39 = arith.constant 0 : index
    %52 = vector.load %arg7[%c6, %c0_38, %c0_39] : memref<8x4x1xf32, #tpu.memory_space<vmem>>, vector<1x4x1xf32>
    %53 = vector.shape_cast %52 : vector<1x4x1xf32> to vector<4x1xf32>
    %54 = vector.broadcast %51 : vector<1x256xf32> to vector<4x256xf32>
    %55 = vector.broadcast %53 : vector<4x1xf32> to vector<4x256xf32>
    %56 = arith.mulf %54, %55 : vector<4x256xf32>
    %57 = arith.addf %49, %56 : vector<4x256xf32>
    %c3_40 = arith.constant 3 : index
    %c0_41 = arith.constant 0 : index
    %c0_42 = arith.constant 0 : index
    %58 = vector.load %arg3[%c3_40, %c0_41, %c0_42] : memref<4x1x256xf32, #tpu.memory_space<vmem>>, vector<1x1x256xf32>
    %59 = vector.shape_cast %58 : vector<1x1x256xf32> to vector<1x256xf32>
    %c7 = arith.constant 7 : index
    %c0_43 = arith.constant 0 : index
    %c0_44 = arith.constant 0 : index
    %60 = vector.load %arg7[%c7, %c0_43, %c0_44] : memref<8x4x1xf32, #tpu.memory_space<vmem>>, vector<1x4x1xf32>
    %61 = vector.shape_cast %60 : vector<1x4x1xf32> to vector<4x1xf32>
    %62 = vector.broadcast %59 : vector<1x256xf32> to vector<4x256xf32>
    %63 = vector.broadcast %61 : vector<4x1xf32> to vector<4x256xf32>
    %64 = arith.mulf %62, %63 : vector<4x256xf32>
    %65 = arith.addf %57, %64 : vector<4x256xf32>
    %c0_45 = arith.constant 0 : index
    %c0_46 = arith.constant 0 : index
    %c0_47 = arith.constant 0 : index
    %66 = vector.load %arg4[%c0_45, %c0_46, %c0_47] : memref<4x1x256xf32, #tpu.memory_space<vmem>>, vector<1x1x256xf32>
    %67 = vector.shape_cast %66 : vector<1x1x256xf32> to vector<1x256xf32>
    %c4_48 = arith.constant 4 : index
    %c0_49 = arith.constant 0 : index
    %c0_50 = arith.constant 0 : index
    %68 = vector.load %arg7[%c4_48, %c0_49, %c0_50] : memref<8x4x1xf32, #tpu.memory_space<vmem>>, vector<1x4x1xf32>
    %69 = vector.shape_cast %68 : vector<1x4x1xf32> to vector<4x1xf32>
    %70 = vector.broadcast %67 : vector<1x256xf32> to vector<4x256xf32>
    %71 = vector.broadcast %69 : vector<4x1xf32> to vector<4x256xf32>
    %72 = arith.mulf %70, %71 : vector<4x256xf32>
    %c1_51 = arith.constant 1 : index
    %c0_52 = arith.constant 0 : index
    %c0_53 = arith.constant 0 : index
    %73 = vector.load %arg4[%c1_51, %c0_52, %c0_53] : memref<4x1x256xf32, #tpu.memory_space<vmem>>, vector<1x1x256xf32>
    %74 = vector.shape_cast %73 : vector<1x1x256xf32> to vector<1x256xf32>
    %c5_54 = arith.constant 5 : index
    %c0_55 = arith.constant 0 : index
    %c0_56 = arith.constant 0 : index
    %75 = vector.load %arg7[%c5_54, %c0_55, %c0_56] : memref<8x4x1xf32, #tpu.memory_space<vmem>>, vector<1x4x1xf32>
    %76 = vector.shape_cast %75 : vector<1x4x1xf32> to vector<4x1xf32>
    %77 = vector.broadcast %74 : vector<1x256xf32> to vector<4x256xf32>
    %78 = vector.broadcast %76 : vector<4x1xf32> to vector<4x256xf32>
    %79 = arith.mulf %77, %78 : vector<4x256xf32>
    %80 = arith.addf %72, %79 : vector<4x256xf32>
    %c2_57 = arith.constant 2 : index
    %c0_58 = arith.constant 0 : index
    %c0_59 = arith.constant 0 : index
    %81 = vector.load %arg4[%c2_57, %c0_58, %c0_59] : memref<4x1x256xf32, #tpu.memory_space<vmem>>, vector<1x1x256xf32>
    %82 = vector.shape_cast %81 : vector<1x1x256xf32> to vector<1x256xf32>
    %c6_60 = arith.constant 6 : index
    %c0_61 = arith.constant 0 : index
    %c0_62 = arith.constant 0 : index
    %83 = vector.load %arg7[%c6_60, %c0_61, %c0_62] : memref<8x4x1xf32, #tpu.memory_space<vmem>>, vector<1x4x1xf32>
    %84 = vector.shape_cast %83 : vector<1x4x1xf32> to vector<4x1xf32>
    %85 = vector.broadcast %82 : vector<1x256xf32> to vector<4x256xf32>
    %86 = vector.broadcast %84 : vector<4x1xf32> to vector<4x256xf32>
    %87 = arith.mulf %85, %86 : vector<4x256xf32>
    %88 = arith.addf %80, %87 : vector<4x256xf32>
    %c3_63 = arith.constant 3 : index
    %c0_64 = arith.constant 0 : index
    %c0_65 = arith.constant 0 : index
    %89 = vector.load %arg4[%c3_63, %c0_64, %c0_65] : memref<4x1x256xf32, #tpu.memory_space<vmem>>, vector<1x1x256xf32>
    %90 = vector.shape_cast %89 : vector<1x1x256xf32> to vector<1x256xf32>
    %c7_66 = arith.constant 7 : index
    %c0_67 = arith.constant 0 : index
    %c0_68 = arith.constant 0 : index
    %91 = vector.load %arg7[%c7_66, %c0_67, %c0_68] : memref<8x4x1xf32, #tpu.memory_space<vmem>>, vector<1x4x1xf32>
    %92 = vector.shape_cast %91 : vector<1x4x1xf32> to vector<4x1xf32>
    %93 = vector.broadcast %90 : vector<1x256xf32> to vector<4x256xf32>
    %94 = vector.broadcast %92 : vector<4x1xf32> to vector<4x256xf32>
    %95 = arith.mulf %93, %94 : vector<4x256xf32>
    %96 = arith.addf %88, %95 : vector<4x256xf32>
    %c0_69 = arith.constant 0 : index
    %c0_70 = arith.constant 0 : index
    %97 = vector.load %arg8[%c0_69, %c0_70] : memref<4x256xf32, #tpu.memory_space<vmem>>, vector<4x256xf32>
    %c0_71 = arith.constant 0 : index
    %c0_72 = arith.constant 0 : index
    %98 = vector.load %arg5[%c0_71, %c0_72] : memref<1x256xf32, #tpu.memory_space<vmem>>, vector<1x256xf32>
    %99 = vector.broadcast %98 : vector<1x256xf32> to vector<4x256xf32>
    %100 = arith.mulf %99, %97 : vector<4x256xf32>
    %cst = arith.constant dense<0.000000e+00> : vector<4xf32>
    %101 = vector.multi_reduction <add>, %100, %cst [1] : vector<4x256xf32> to vector<4xf32>
    %102 = vector.shape_cast %101 : vector<4xf32> to vector<4x1xf32>
    %cst_73 = arith.constant 1.250000e-01 : f32
    %103 = vector.broadcast %cst_73 : f32 to vector<4x1xf32>
    %104 = arith.mulf %102, %103 : vector<4x1xf32>
    %c0_74 = arith.constant 0 : index
    %c0_75 = arith.constant 0 : index
    %105 = vector.load %arg6[%c0_74, %c0_75] : memref<1x256xf32, #tpu.memory_space<vmem>>, vector<1x256xf32>
    %106 = vector.broadcast %105 : vector<1x256xf32> to vector<4x256xf32>
    %107 = arith.mulf %106, %97 : vector<4x256xf32>
    %cst_76 = arith.constant dense<0.000000e+00> : vector<4xf32>
    %108 = vector.multi_reduction <add>, %107, %cst_76 [1] : vector<4x256xf32> to vector<4xf32>
    %109 = vector.shape_cast %108 : vector<4xf32> to vector<4x1xf32>
    %cst_77 = arith.constant 1.250000e-01 : f32
    %110 = vector.broadcast %cst_77 : f32 to vector<4x1xf32>
    %111 = arith.mulf %109, %110 : vector<4x1xf32>
    %112 = arith.addf %34, %65 : vector<4x256xf32>
    %113 = vector.broadcast %104 : vector<4x1xf32> to vector<4x256xf32>
    %114 = arith.addf %112, %113 : vector<4x256xf32>
    %115 = vector.broadcast %3 : vector<4x1xf32> to vector<4x256xf32>
    %116 = arith.addf %114, %115 : vector<4x256xf32>
    %117 = vector.broadcast %0 : f32 to vector<4x256xf32>
    %118 = arith.mulf %116, %117 : vector<4x256xf32>
    %119 = arith.addf %34, %65 : vector<4x256xf32>
    %120 = vector.broadcast %111 : vector<4x1xf32> to vector<4x256xf32>
    %121 = arith.addf %119, %120 : vector<4x256xf32>
    %122 = vector.broadcast %3 : vector<4x1xf32> to vector<4x256xf32>
    %123 = arith.addf %121, %122 : vector<4x256xf32>
    %124 = vector.broadcast %0 : f32 to vector<4x256xf32>
    %125 = arith.mulf %123, %124 : vector<4x256xf32>
    %126 = arith.addf %34, %96 : vector<4x256xf32>
    %127 = vector.broadcast %111 : vector<4x1xf32> to vector<4x256xf32>
    %128 = arith.addf %126, %127 : vector<4x256xf32>
    %129 = vector.broadcast %3 : vector<4x1xf32> to vector<4x256xf32>
    %130 = arith.addf %128, %129 : vector<4x256xf32>
    %131 = vector.broadcast %0 : f32 to vector<4x256xf32>
    %132 = arith.mulf %130, %131 : vector<4x256xf32>
    %133 = arith.subf %118, %125 : vector<4x256xf32>
    %134 = vector.broadcast %1 : f32 to vector<4x256xf32>
    %135 = arith.mulf %134, %133 : vector<4x256xf32>
    %136 = arith.addf %132, %135 : vector<4x256xf32>
    %137 = arith.subf %125, %132 : vector<4x256xf32>
    %138 = vector.broadcast %2 : f32 to vector<4x256xf32>
    %139 = arith.mulf %138, %137 : vector<4x256xf32>
    %140 = arith.addf %136, %139 : vector<4x256xf32>
    %c0_78 = arith.constant 0 : index
    %c0_79 = arith.constant 0 : index
    %141 = vector.load %arg10[%c0_78, %c0_79] : memref<4x256xf32, #tpu.memory_space<vmem>>, vector<4x256xf32>
    tpu.vector_store %arg10[%c0_78, %c0_79], %140 {strides = array<i32>} : memref<4x256xf32, #tpu.memory_space<vmem>>, vector<4x256xf32>,
    return
  }
  func.func @transform_0(%arg0: i32) -> i32 {
    %c0_i32 = arith.constant 0 : i32
    %c0_i32_0 = arith.constant 0 : i32
    return %c0_i32 : i32
  }
  func.func @transform_1(%arg0: i32) -> (i32, i32, i32) {
    %c0_i32 = arith.constant 0 : i32
    %c0_i32_0 = arith.constant 0 : i32
    %c0_i32_1 = arith.constant 0 : i32
    %c0_i32_2 = arith.constant 0 : i32
    return %c0_i32, %c0_i32_0, %c0_i32_1 : i32, i32, i32
  }
  func.func @transform_2(%arg0: i32) -> (i32, i32, i32) {
    %c0_i32 = arith.constant 0 : i32
    %c0_i32_0 = arith.constant 0 : i32
    %c0_i32_1 = arith.constant 0 : i32
    %c0_i32_2 = arith.constant 0 : i32
    return %c0_i32, %c0_i32_0, %c0_i32_1 : i32, i32, i32
  }
  func.func @transform_3(%arg0: i32) -> (i32, i32, i32) {
    %c0_i32 = arith.constant 0 : i32
    %c0_i32_0 = arith.constant 0 : i32
    %c0_i32_1 = arith.constant 0 : i32
    %c0_i32_2 = arith.constant 0 : i32
    return %c0_i32, %c0_i32_0, %c0_i32_1 : i32, i32, i32
  }
  func.func @transform_4(%arg0: i32) -> (i32, i32) {
    %c0_i32 = arith.constant 0 : i32
    %c0_i32_0 = arith.constant 0 : i32
    %c0_i32_1 = arith.constant 0 : i32
    return %c0_i32, %c0_i32_0 : i32, i32
  }
  func.func @transform_5(%arg0: i32) -> (i32, i32) {
    %c0_i32 = arith.constant 0 : i32
    %c0_i32_0 = arith.constant 0 : i32
    %c0_i32_1 = arith.constant 0 : i32
    return %c0_i32, %c0_i32_0 : i32, i32
  }
  func.func @transform_6(%arg0: i32) -> (i32, i32, i32) {
    %c0_i32 = arith.constant 0 : i32
    %c0_i32_0 = arith.constant 0 : i32
    %c0_i32_1 = arith.constant 0 : i32
    %c0_i32_2 = arith.constant 0 : i32
    return %c0_i32, %c0_i32_0, %c0_i32_1 : i32, i32, i32
  }
  func.func @transform_7(%arg0: i32) -> (i32, i32) {
    %c0_i32 = arith.constant 0 : i32
    %c0_i32_0 = arith.constant 0 : i32
    %c0_i32_1 = arith.constant 0 : i32
    return %c0_i32, %c0_i32_0 : i32, i32
  }
  func.func @transform_8(%arg0: i32) -> (i32, i32) {
    %c0_i32 = arith.constant 0 : i32
    %c0_i32_0 = arith.constant 0 : i32
    %c0_i32_1 = arith.constant 0 : i32
    return %c0_i32, %c0_i32_0 : i32, i32
  }
  func.func @transform_9(%arg0: i32) -> (i32, i32) {
    %c0_i32 = arith.constant 0 : i32
    %c0_i32_0 = arith.constant 0 : i32
    %c0_i32_1 = arith.constant 0 : i32
    return %c0_i32, %c0_i32_0 : i32, i32
  }
}

</mosaic_0001>

<llo_original>
// kernel: tile.9
$region0: #{tile.9}
  %s0 = inlined_call_operand.vmem [shape: f32[4,8,32], index: 0, kind: input, shape index: {}]
  %s1 = inlined_call_operand.vmem [shape: f32[4,256], index: 1, kind: output, shape index: {}]
  $region1: #{tile.9} parent=0
    #allocation0 [shape = 'u8[8192]{0}', space=vmem, size = 0x2000, scoped, tag = 'scoped mem for output reshape']
    %v2 = vld [vmem:[%s0] ss:$4 sm:$0xff]
    %vm3 = vcmask 261120
    %4 = vst.msk [vmem:[#allocation0] ss:$8 sm:$0x3] %vm3, %v2
    %s5 = scalar_lea.vmem [#allocation0], 4294967281
    %6 = vst.msk [vmem:[%s5] ss:$8 sm:$0xc] %vm3, %v2
    %s7 = scalar_lea.vmem [#allocation0], 4294967266
    %8 = vst.msk [vmem:[%s7] ss:$8 sm:$0x30] %vm3, %v2
    %s9 = scalar_lea.vmem [#allocation0], 4294967251
    %10 = vst.msk [vmem:[%s9] ss:$8 sm:$0xc0] %vm3, %v2
    %s11 = scalar_lea.vmem %s0, 3
    %v12 = vld [vmem:[%s11] ss:$8 sm:$0xf]
    %s13 = scalar_lea.vmem %s0, 4294967271
    %v14 = vld [vmem:[%s13] ss:$8 sm:$0xf0]
    %vm15 = vcmask 1047556
    %v16 = vsel %vm15, %v14, %v12
    %17 = vrot.lane.b32.xlu0 %v16, 96
    %v18 = vpop.permute.xlu0 %17
    %vm19 = vcmask 1048320
    %20 = vst.msk [vmem:[#allocation0] sm:$0xf] %vm19, %v18
    %s21 = scalar_lea.vmem [#allocation0], 4
    %22 = vst.msk [vmem:[%s21] sm:$0xf0] %vm19, %v18
    %s23 = scalar_lea.vmem %s0, 2
    %v24 = vld [vmem:[%s23] ss:$8 sm:$0xf]
    %s25 = scalar_lea.vmem %s0, 4294967270
    %v26 = vld [vmem:[%s25] ss:$8 sm:$0xf0]
    %vm27 = vcmask 1047556
    %v28 = vsel %vm27, %v26, %v24
    %29 = vrot.lane.b32.xlu0 %v28, 64
    %v30 = vpop.permute.xlu0 %29
    %vm31 = vcmask 785920
    %32 = vst.msk [vmem:[#allocation0] sm:$0xf] %vm31, %v30
    %s33 = scalar_lea.vmem [#allocation0], 4
    %34 = vst.msk [vmem:[%s33] sm:$0xf0] %vm31, %v30
    %s35 = scalar_lea.vmem %s0, 1
    %v36 = vld [vmem:[%s35] ss:$8 sm:$0xf]
    %s37 = scalar_lea.vmem %s0, 4294967269
    %v38 = vld [vmem:[%s37] ss:$8 sm:$0xf0]
    %vm39 = vcmask 1047556
    %v40 = vsel %vm39, %v38, %v36
    %41 = vrot.lane.b32.xlu0 %v40, 32
    %v42 = vpop.permute.xlu0 %41
    %vm43 = vcmask 523520
    %44 = vst.msk [vmem:[#allocation0] sm:$0xf] %vm43, %v42
    %s45 = scalar_lea.vmem [#allocation0], 4
    %46 = vst.msk [vmem:[%s45] sm:$0xf0] %vm43, %v42
    %s48 = sshllo.u32 0, 4
    %v50 = vld [vmem:[#allocation0] sm:%s48]
    %s51 = sshllo.u32 0, 4
    %52 = vst [vmem:[%s1] sm:%s51] %v50
    %s53 = scalar_lea.vmem [#allocation0], 8
    %v54 = vld [vmem:[%s53] sm:%s48]
    %s55 = sshllo.u32 0, 4
    %s56 = scalar_lea.vmem %s1, 4
    %57 = vst [vmem:[%s56] sm:%s55] %v54

// kernel: cfg_denoiser_forward.1
$region0: #{cfg_denoiser_forward.1}
  #allocation0 [shape = 'u32[]', space=smem, size = 0x4, offset = 0x4, fixed_abs, tag = 'smem constant byte address 0x4 - core index']
  #allocation1 [shape = 'u32[144,128]{1,0:T(1,128)}', space=vmem, size = 0x12000, scoped, tag = 'internal scratch']
  %s0 = inlined_call_operand.vmem [shape: f32[3], index: 0, kind: input, shape index: {}]
  %s1 = inlined_call_operand.vmem [shape: f32[4,1,256], index: 1, kind: input, shape index: {}]
  %s2 = inlined_call_operand.vmem [shape: f32[4,1,256], index: 2, kind: input, shape index: {}]
  %s3 = inlined_call_operand.vmem [shape: f32[4,1,256], index: 3, kind: input, shape index: {}]
  %s4 = inlined_call_operand.vmem [shape: f32[1,256], index: 4, kind: input, shape index: {}]
  %s5 = inlined_call_operand.vmem [shape: f32[1,256], index: 5, kind: input, shape index: {}]
  %s6 = inlined_call_operand.vmem [shape: f32[8,4,1], index: 6, kind: input, shape index: {}]
  %s7 = inlined_call_operand.vmem [shape: f32[4,256], index: 7, kind: input, shape index: {}]
  %s8 = inlined_call_operand.vmem [shape: f32[4,1], index: 8, kind: input, shape index: {}]
  %s9 = inlined_call_operand.vmem [shape: f32[4,256], index: 9, kind: output, shape index: {}]
  %s10 = sld [smem:[#allocation0]]
  $region50: #{cfg_denoiser_forward.1} parent=0
    _
  %s12 = ssub.s32 1, %s10
  %s13 = scalar_select 0, %s12, %s10
  $region1: #{cfg_denoiser_forward.1} parent=0
    #allocation2 [shape = 'u8[512]{0}', space=smem, size = 0x200, scoped, tag = 'input window, operand 0, single buffered']
    #allocation3 [shape = 's32[1]{0}', space=sflag, size = 0x4, scoped, tag = 'scoped memory for cfg_denoiser_forward.1']
    %14 = vsyncpa [#allocation3], 0
    // Predicated region
    $region2: #{cfg_denoiser_forward.1} parent=1 // pred_check
      _
    $region3: #{cfg_denoiser_forward.1} parent=1 // pred_check_branch
      %16 = sbr.rel (0) target = $region5
    $region4: #{cfg_denoiser_forward.1} parent=1 // pred_region
      %s18 = ssub.s32 16, 16
      %19 = vsyncadd [#allocation3], %s18
      %s21 = sshll.u32 %s0, 4
      %s22 = int_to_ptr.vmem [resolvable:$true] %s21
      %24 = dma.vmem_to_smem %s22, 16, [#allocation2], [#allocation3]
    $region5: #{cfg_denoiser_forward.1} parent=1 // pred_fallthru
      _
    // Predicated region
    $region6: #{cfg_denoiser_forward.1} parent=1 // pred_check
      _
    $region7: #{cfg_denoiser_forward.1} parent=1 // pred_check_branch
      %26 = sbr.rel (0) target = $region9
    $region8: #{cfg_denoiser_forward.1} parent=1 // pred_region
      _
    $region9: #{cfg_denoiser_forward.1} parent=1 // pred_fallthru
      _
    // Predicated region
    $region10: #{cfg_denoiser_forward.1} parent=1 // pred_check
      _
    $region11: #{cfg_denoiser_forward.1} parent=1 // pred_check_branch
      %28 = sbr.rel (0) target = $region13
    $region12: #{cfg_denoiser_forward.1} parent=1 // pred_region
      _
    $region13: #{cfg_denoiser_forward.1} parent=1 // pred_fallthru
      _
    // Predicated region
    $region14: #{cfg_denoiser_forward.1} parent=1 // pred_check
      _
    $region15: #{cfg_denoiser_forward.1} parent=1 // pred_check_branch
      %30 = sbr.rel (0) target = $region17
    $region16: #{cfg_denoiser_forward.1} parent=1 // pred_region
      _
    $region17: #{cfg_denoiser_forward.1} parent=1 // pred_fallthru
      _
    // Predicated region
    $region18: #{cfg_denoiser_forward.1} parent=1 // pred_check
      _
    $region19: #{cfg_denoiser_forward.1} parent=1 // pred_check_branch
      %32 = sbr.rel (0) target = $region21
    $region20: #{cfg_denoiser_forward.1} parent=1 // pred_region
      _
    $region21: #{cfg_denoiser_forward.1} parent=1 // pred_fallthru
      _
    // Predicated region
    $region22: #{cfg_denoiser_forward.1} parent=1 // pred_check
      _
    $region23: #{cfg_denoiser_forward.1} parent=1 // pred_check_branch
      %34 = sbr.rel (0) target = $region25
    $region24: #{cfg_denoiser_forward.1} parent=1 // pred_region
      _
    $region25: #{cfg_denoiser_forward.1} parent=1 // pred_fallthru
      _
    // Predicated region
    $region26: #{cfg_denoiser_forward.1} parent=1 // pred_check
      _
    $region27: #{cfg_denoiser_forward.1} parent=1 // pred_check_branch
      %36 = sbr.rel (0) target = $region29
    $region28: #{cfg_denoiser_forward.1} parent=1 // pred_region
      _
    $region29: #{cfg_denoiser_forward.1} parent=1 // pred_fallthru
      _
    // Predicated region
    $region30: #{cfg_denoiser_forward.1} parent=1 // pred_check
      _
    $region31: #{cfg_denoiser_forward.1} parent=1 // pred_check_branch
      %38 = sbr.rel (0) target = $region33
    $region32: #{cfg_denoiser_forward.1} parent=1 // pred_region
      _
    $region33: #{cfg_denoiser_forward.1} parent=1 // pred_fallthru
      _
    // Predicated region
    $region34: #{cfg_denoiser_forward.1} parent=1 // pred_check
      _
    $region35: #{cfg_denoiser_forward.1} parent=1 // pred_check_branch
      %40 = sbr.rel (0) target = $region37
    $region36: #{cfg_denoiser_forward.1} parent=1 // pred_region
      _
    $region37: #{cfg_denoiser_forward.1} parent=1 // pred_fallthru
      _
    // Predicated region
    $region38: #{cfg_denoiser_forward.1} parent=1 // pred_check
      _
    $region39: #{cfg_denoiser_forward.1} parent=1 // pred_check_branch
      %42 = sbr.rel (0) target = $region41
    $region40: #{cfg_denoiser_forward.1} parent=1 // pred_region
      %43 = dma.done [#allocation3], 16
    $region41: #{cfg_denoiser_forward.1} parent=1 // pred_fallthru
      _
    %44 = sfence
    %s45 = sld [smem:[#allocation2]]
    %s46 = sld [smem:[#allocation2 + $0x1]]
    %s47 = sld [smem:[#allocation2 + $0x2]]
    %v48 = vld [vmem:[%s8] sm:$0xf]
    %v49 = vld [vmem:[%s1] sm:$0x3]
    %v50 = vld [vmem:[%s6] sm:$0xf]
    %v52 = vlaneseq
    %v53 = vshrl.u32 %v52, 7
    %v54 = vsub.s32 0, %v53
    %v55 = vrot.slane %v49, %v54
    %v56 = vlaneseq
    %v57 = vshrl.u32 %v56, 7
    %v58 = vsub.s32 1, %v57
    %v59 = vrot.slane %v49, %v58
    %63 = vset.pattern.permute.xlu0 0
    %64 = vperm.xlu0 %63, %v50
    %v65 = vpop.permute.xlu0 %64
    %v67 = vmul.f32 %v55, %v65
    %v68 = vmul.f32 %v59, %v65
    %s69 = scalar_lea.vmem %s1, 2
    %v70 = vld [vmem:[%s69] sm:$0x3]
    %s71 = scalar_lea.vmem %s6, 4
    %v72 = vld [vmem:[%s71] sm:$0xf]
    %v74 = vlaneseq
    %v75 = vshrl.u32 %v74, 7
    %v76 = vsub.s32 0, %v75
    %v77 = vrot.slane %v70, %v76
    %v78 = vlaneseq
    %v79 = vshrl.u32 %v78, 7
    %v80 = vsub.s32 1, %v79
    %v81 = vrot.slane %v70, %v80
    %85 = vset.pattern.permute.xlu0 0
    %86 = vperm.xlu0 %85, %v72
    %v87 = vpop.permute.xlu0 %86
    %v89 = vmul.f32 %v77, %v87
    %v90 = vmul.f32 %v81, %v87
    %v91 = vadd.f32 %v67, %v89
    %v92 = vadd.f32 %v68, %v90
    %s93 = scalar_lea.vmem %s1, 4
    %v94 = vld [vmem:[%s93] sm:$0x3]
    %s95 = scalar_lea.vmem %s6, 8
    %v96 = vld [vmem:[%s95] sm:$0xf]
    %v98 = vlaneseq
    %v99 = vshrl.u32 %v98, 7
    %v100 = vsub.s32 0, %v99
    %v101 = vrot.slane %v94, %v100
    %v102 = vlaneseq
    %v103 = vshrl.u32 %v102, 7
    %v104 = vsub.s32 1, %v103
    %v105 = vrot.slane %v94, %v104
    %109 = vset.pattern.permute.xlu0 0
    %110 = vperm.xlu0 %109, %v96
    %v111 = vpop.permute.xlu0 %110
    %v113 = vmul.f32 %v101, %v111
    %v114 = vmul.f32 %v105, %v111
    %v115 = vadd.f32 %v91, %v113
    %v116 = vadd.f32 %v92, %v114
    %s117 = scalar_lea.vmem %s1, 6
    %v118 = vld [vmem:[%s117] sm:$0x3]
    %s119 = scalar_lea.vmem %s6, 12
    %v120 = vld [vmem:[%s119] sm:$0xf]
    %v122 = vlaneseq
    %v123 = vshrl.u32 %v122, 7
    %v124 = vsub.s32 0, %v123
    %v125 = vrot.slane %v118, %v124
    %v126 = vlaneseq
    %v127 = vshrl.u32 %v126, 7
    %v128 = vsub.s32 1, %v127
    %v129 = vrot.slane %v118, %v128
    %133 = vset.pattern.permute.xlu0 0
    %134 = vperm.xlu0 %133, %v120
    %v135 = vpop.permute.xlu0 %134
    %v137 = vmul.f32 %v125, %v135
    %v138 = vmul.f32 %v129, %v135
    %v139 = vadd.f32 %v115, %v137
    %v140 = vadd.f32 %v116, %v138
    %v141 = vld [vmem:[%s2] sm:$0x3]
    %s142 = scalar_lea.vmem %s6, 16
    %v143 = vld [vmem:[%s142] sm:$0xf]
    %v145 = vlaneseq
    %v146 = vshrl.u32 %v145, 7
    %v147 = vsub.s32 0, %v146
    %v148 = vrot.slane %v141, %v147
    %v149 = vlaneseq
    %v150 = vshrl.u32 %v149, 7
    %v151 = vsub.s32 1, %v150
    %v152 = vrot.slane %v141, %v151
    %156 = vset.pattern.permute.xlu0 0
    %157 = vperm.xlu0 %156, %v143
    %v158 = vpop.permute.xlu0 %157
    %v160 = vmul.f32 %v148, %v158
    %v161 = vmul.f32 %v152, %v158
    %s162 = scalar_lea.vmem %s2, 2
    %v163 = vld [vmem:[%s162] sm:$0x3]
    %s164 = scalar_lea.vmem %s6, 20
    %v165 = vld [vmem:[%s164] sm:$0xf]
    %v167 = vlaneseq
    %v168 = vshrl.u32 %v167, 7
    %v169 = vsub.s32 0, %v168
    %v170 = vrot.slane %v163, %v169
    %v171 = vlaneseq
    %v172 = vshrl.u32 %v171, 7
    %v173 = vsub.s32 1, %v172
    %v174 = vrot.slane %v163, %v173
    %178 = vset.pattern.permute.xlu0 0
    %179 = vperm.xlu0 %178, %v165
    %v180 = vpop.permute.xlu0 %179
    %v182 = vmul.f32 %v170, %v180
    %v183 = vmul.f32 %v174, %v180
    %v184 = vadd.f32 %v160, %v182
    %v185 = vadd.f32 %v161, %v183
    %s186 = scalar_lea.vmem %s2, 4
    %v187 = vld [vmem:[%s186] sm:$0x3]
    %s188 = scalar_lea.vmem %s6, 24
    %v189 = vld [vmem:[%s188] sm:$0xf]
    %v191 = vlaneseq
    %v192 = vshrl.u32 %v191, 7
    %v193 = vsub.s32 0, %v192
    %v194 = vrot.slane %v187, %v193
    %v195 = vlaneseq
    %v196 = vshrl.u32 %v195, 7
    %v197 = vsub.s32 1, %v196
    %v198 = vrot.slane %v187, %v197
    %202 = vset.pattern.permute.xlu0 0
    %203 = vperm.xlu0 %202, %v189
    %v204 = vpop.permute.xlu0 %203
    %v206 = vmul.f32 %v194, %v204
    %v207 = vmul.f32 %v198, %v204
    %v208 = vadd.f32 %v184, %v206
    %v209 = vadd.f32 %v185, %v207
    %s210 = scalar_lea.vmem %s2, 6
    %v211 = vld [vmem:[%s210] sm:$0x3]
    %s212 = scalar_lea.vmem %s6, 28
    %v213 = vld [vmem:[%s212] sm:$0xf]
    %v215 = vlaneseq
    %v216 = vshrl.u32 %v215, 7
    %v217 = vsub.s32 0, %v216
    %v218 = vrot.slane %v211, %v217
    %v219 = vlaneseq
    %v220 = vshrl.u32 %v219, 7
    %v221 = vsub.s32 1, %v220
    %v222 = vrot.slane %v211, %v221
    %226 = vset.pattern.permute.xlu0 0
    %227 = vperm.xlu0 %226, %v213
    %v228 = vpop.permute.xlu0 %227
    %v230 = vmul.f32 %v218, %v228
    %v231 = vmul.f32 %v222, %v228
    %v232 = vadd.f32 %v208, %v230
    %v233 = vadd.f32 %v209, %v231
    %v234 = vld [vmem:[%s3] sm:$0x3]
    %v236 = vlaneseq
    %v237 = vshrl.u32 %v236, 7
    %v238 = vsub.s32 0, %v237
    %v239 = vrot.slane %v234, %v238
    %v240 = vlaneseq
    %v241 = vshrl.u32 %v240, 7
    %v242 = vsub.s32 1, %v241
    %v243 = vrot.slane %v234, %v242
    %v246 = vmul.f32 %v239, %v158
    %v247 = vmul.f32 %v243, %v158
    %s248 = scalar_lea.vmem %s3, 2
    %v249 = vld [vmem:[%s248] sm:$0x3]
    %v251 = vlaneseq
    %v252 = vshrl.u32 %v251, 7
    %v253 = vsub.s32 0, %v252
    %v254 = vrot.slane %v249, %v253
    %v255 = vlaneseq
    %v256 = vshrl.u32 %v255, 7
    %v257 = vsub.s32 1, %v256
    %v258 = vrot.slane %v249, %v257
    %v261 = vmul.f32 %v254, %v180
    %v262 = vmul.f32 %v258, %v180
    %v263 = vadd.f32 %v246, %v261
    %v264 = vadd.f32 %v247, %v262
    %s265 = scalar_lea.vmem %s3, 4
    %v266 = vld [vmem:[%s265] sm:$0x3]
    %v268 = vlaneseq
    %v269 = vshrl.u32 %v268, 7
    %v270 = vsub.s32 0, %v269
    %v271 = vrot.slane %v266, %v270
    %v272 = vlaneseq
    %v273 = vshrl.u32 %v272, 7
    %v274 = vsub.s32 1, %v273
    %v275 = vrot.slane %v266, %v274
    %v278 = vmul.f32 %v271, %v204
    %v279 = vmul.f32 %v275, %v204
    %v280 = vadd.f32 %v263, %v278
    %v281 = vadd.f32 %v264, %v279
    %s282 = scalar_lea.vmem %s3, 6
    %v283 = vld [vmem:[%s282] sm:$0x3]
    %v285 = vlaneseq
    %v286 = vshrl.u32 %v285, 7
    %v287 = vsub.s32 0, %v286
    %v288 = vrot.slane %v283, %v287
    %v289 = vlaneseq
    %v290 = vshrl.u32 %v289, 7
    %v291 = vsub.s32 1, %v290
    %v292 = vrot.slane %v283, %v291
    %v295 = vmul.f32 %v288, %v228
    %v296 = vmul.f32 %v292, %v228
    %v297 = vadd.f32 %v280, %v295
    %v298 = vadd.f32 %v281, %v296
    %v299 = vld [vmem:[%s7] sm:$0xff]
    %v300 = vld [vmem:[%s4] sm:$0x3]
    %v302 = vlaneseq
    %v303 = vshrl.u32 %v302, 7
    %v304 = vsub.s32 0, %v303
    %v305 = vrot.slane %v300, %v304
    %v306 = vlaneseq
    %v307 = vshrl.u32 %v306, 7
    %v308 = vsub.s32 1, %v307
    %v309 = vrot.slane %v300, %v308
    %v313 = vcombine.high %v299, %v299
    %v315 = vmul.f32 %v305, %v299
    %v316 = vmul.f32 %v309, %v313
    %vm317 = vcmask 1043456
    %v318 = vsel %vm317, %v315, 0.0
    %v319 = vsel %vm317, %v316, 0.0
    %v320 = vadd.f32 %v318, %v319
    %321 = vadd.xlane.f32.xlu0 %v320
    %v322 = vpop.xlane.xlu0 %321
    %v323 = vmul.f32 %v322, 0.125
    %v324 = vld [vmem:[%s5] sm:$0x3]
    %v326 = vlaneseq
    %v327 = vshrl.u32 %v326, 7
    %v328 = vsub.s32 0, %v327
    %v329 = vrot.slane %v324, %v328
    %v330 = vlaneseq
    %v331 = vshrl.u32 %v330, 7
    %v332 = vsub.s32 1, %v331
    %v333 = vrot.slane %v324, %v332
    %v336 = vmul.f32 %v329, %v299
    %v337 = vmul.f32 %v333, %v313
    %v338 = vsel %vm317, %v336, 0.0
    %v339 = vsel %vm317, %v337, 0.0
    %v340 = vadd.f32 %v338, %v339
    %341 = vadd.xlane.f32.xlu0 %v340
    %v342 = vpop.xlane.xlu0 %341
    %v343 = vmul.f32 %v342, 0.125
    %v344 = vadd.f32 %v139, %v232
    %v345 = vadd.f32 %v140, %v233
    %v346 = vadd.f32 %v344, %v323
    %v347 = vadd.f32 %v345, %v323
    %349 = vset.pattern.permute.xlu0 0
    %350 = vperm.xlu0 %349, %v48
    %v351 = vpop.permute.xlu0 %350
    %v353 = vadd.f32 %v346, %v351
    %v354 = vadd.f32 %v347, %v351
    %v355 = vstv %s45
    %v356 = vmul.f32 %v353, %v355
    %v357 = vmul.f32 %v354, %v355
    %v358 = vadd.f32 %v344, %v343
    %v359 = vadd.f32 %v345, %v343
    %v360 = vadd.f32 %v358, %v351
    %v361 = vadd.f32 %v359, %v351
    %v362 = vmul.f32 %v360, %v355
    %v363 = vmul.f32 %v361, %v355
    %v364 = vadd.f32 %v139, %v297
    %v365 = vadd.f32 %v140, %v298
    %v366 = vadd.f32 %v364, %v343
    %v367 = vadd.f32 %v365, %v343
    %v368 = vadd.f32 %v366, %v351
    %v369 = vadd.f32 %v367, %v351
    %v370 = vmul.f32 %v368, %v355
    %v371 = vmul.f32 %v369, %v355
    %v372 = vsub.f32 %v356, %v362
    %v373 = vsub.f32 %v357, %v363
    %v374 = vstv %s46
    %v375 = vmul.f32 %v374, %v372
    %v376 = vmul.f32 %v374, %v373
    %v377 = vadd.f32 %v370, %v375
    %v378 = vadd.f32 %v371, %v376
    %v379 = vsub.f32 %v362, %v370
    %v380 = vsub.f32 %v363, %v371
    %v381 = vstv %s47
    %v382 = vmul.f32 %v381, %v379
    %v383 = vmul.f32 %v381, %v380
    %v384 = vadd.f32 %v377, %v382
    %v385 = vadd.f32 %v378, %v383
    %v388 = vcombine.low %v384, %v385
    %390 = vst [vmem:[%s9] sm:$0xff] %v388
    // Predicated region
    $region42: #{cfg_denoiser_forward.1} parent=1 // pred_check
      _
    $region43: #{cfg_denoiser_forward.1} parent=1 // pred_check_branch
      %392 = sbr.rel (0) target = $region45
    $region44: #{cfg_denoiser_forward.1} parent=1 // pred_region
      _
    $region45: #{cfg_denoiser_forward.1} parent=1 // pred_fallthru
      _
    // Predicated region
    $region46: #{cfg_denoiser_forward.1} parent=1 // pred_check
      _
    $region47: #{cfg_denoiser_forward.1} parent=1 // pred_check_branch
      %394 = sbr.rel (0) target = $region49
    $region48: #{cfg_denoiser_forward.1} parent=1 // pred_region
      _
    $region49: #{cfg_denoiser_forward.1} parent=1 // pred_fallthru
      _
    %395 = vsyncpa [#allocation3], 1

</llo_original>
